<compile_context>
chip_gen: v7x
topology: tpu7x:2x2x1
jax: 0.10.0
libtpu: 0.0.40
codegen_flags: <defaults>
</compile_context>

<pallas_src>
import functools

import numpy as np
import jax
import jax.numpy as jnp
from jax import lax
from jax.experimental import pallas as pl
from jax.experimental.pallas import tpu as pltpu


def _round_up(x, m):
    return ((max(int(x), 1) + m - 1) // m) * m


def _scatter_kernel(grp_ref, ux_ref, pay_ref, dst_ref, out_ref, acc_ref,
                    *, hp, v_blk, aggregation):
    """One grid step = one tile of dst-sorted, block-aligned (padded) edges.

    acc += one_hot(dst in this node block) @ [gated | gate]  (bf16 MXU, f32 acc)
    """
    f32 = jnp.float32
    t = pl.program_id(0)
    n_t = pl.num_programs(0)

    g = grp_ref[t]                                        # node block id
    g_prev = grp_ref[jnp.maximum(t - 1, 0)]
    g_next = grp_ref[jnp.minimum(t + 1, n_t - 1)]
    first = jnp.logical_or(t == 0, g != g_prev)           # first tile of group
    last = jnp.logical_or(t == n_t - 1, g != g_next)      # last tile of group

    @pl.when(first)
    def _prologue():
        acc_ref[...] = jnp.zeros_like(acc_ref)

    tile_e = dst_ref.shape[1]
    # One-hot scatter matrix restricted to this node block.  Padded edge slots
    # carry dst = -1, so their columns are all-zero (0/1 is exact in bf16).
    row_ids = lax.broadcasted_iota(jnp.int32, (v_blk, tile_e), 0) + g * v_blk
    dt = (dst_ref[...] == row_ids).astype(jnp.bfloat16)           # (v_blk, E_t)
    acc_ref[...] += jnp.dot(dt, pay_ref[...],                      # (v_blk, Wp)
                            preferred_element_type=f32)

    @pl.when(last)
    def _epilogue():
        acc = acc_ref[...]
        agg = acc[:, :hp]
        if aggregation == 'mean':
            # gate_sum lives in lanes [hp, 2*hp); reciprocal goes to the EUP.
            agg = agg * pl.reciprocal(acc[:, hp:] + 1e-20, approx=True)
        out_ref[...] = (ux_ref[...] + agg).astype(out_ref.dtype)


def node_features(x, edge_gate, edge_index, params, aggregation='mean',
                  *, v_blk=256, tile_e=256, lane=128):
    """x: (V, H) node features, edge_gate: (E, H), edge_index: (src, dst)."""
    assert aggregation in ('mean', 'sum')
    V, H = x.shape
    E = edge_gate.shape[0]
    src, dst = edge_index
    f32, bf16 = jnp.float32, jnp.bfloat16

    Hp = _round_up(H, lane)
    Vp = _round_up(V, v_blk)
    nb = Vp // v_blk
    Wp = 2 * Hp if aggregation == 'mean' else Hp

    # ---- dense GEMMs (once, plain XLA; no per-node-block recompute) -------
    Ux = x.astype(f32) @ params['Uw'].astype(f32) + params['Ub'].astype(f32)
    Vx = x.astype(f32) @ params['Vw'].astype(f32) + params['Vb'].astype(f32)

    # ---- host-side edge grouping: sort by dst, tile_e-aligned groups ------
    dst_np = np.asarray(jax.device_get(dst)).astype(np.int64)
    order_np = np.argsort(dst_np, kind='stable')
    dst_sorted_np = dst_np[order_np]
    grp_of_edge = dst_sorted_np // v_blk                           # (E,)
    counts = np.bincount(grp_of_edge, minlength=nb)[:nb]
    blocks_per_group = np.maximum(1, -(-counts // tile_e))         # >= 1 each
    T = int(blocks_per_group.sum())
    group_block_start = np.zeros(nb, dtype=np.int64)
    group_block_start[1:] = np.cumsum(blocks_per_group)[:-1]
    group_edge_start = np.zeros(nb, dtype=np.int64)
    group_edge_start[1:] = np.cumsum(counts)[:-1]
    within = np.arange(E, dtype=np.int64) - group_edge_start[grp_of_edge]
    padded_pos_np = group_block_start[grp_of_edge] * tile_e + within
    block_to_group = np.repeat(np.arange(nb, dtype=np.int32), blocks_per_group)
    Ep = T * tile_e

    order = jnp.asarray(order_np.astype(np.int32))
    padded_pos = jnp.asarray(padded_pos_np.astype(np.int32))

    # ---- device-side payload build (gather is v-invariant, done once) -----
    src_s = jnp.asarray(src).astype(jnp.int32)[order]
    gate_s = edge_gate[order].astype(f32)
    gated = Vx[src_s] * gate_s                                     # (E, H)

    payload = jnp.zeros((Ep, Wp), bf16)
    payload = payload.at[padded_pos, :H].set(gated.astype(bf16))
    if aggregation == 'mean':
        payload = payload.at[padded_pos, Hp:Hp + H].set(gate_s.astype(bf16))

    dst_pad = jnp.full((1, Ep), -1, jnp.int32)
    dst_pad = dst_pad.at[0, padded_pos].set(
        jnp.asarray(dst_sorted_np.astype(np.int32)))

    ux_p = jnp.zeros((Vp, Hp), f32).at[:V, :H].set(Ux)

    kernel = functools.partial(_scatter_kernel, hp=Hp, v_blk=v_blk,
                               aggregation=aggregation)

    grid_spec = pltpu.PrefetchScalarGridSpec(
        num_scalar_prefetch=1,                  # block -> node-block map (SMEM)
        grid=(T,),
        in_specs=[
            pl.BlockSpec((v_blk, Hp), lambda t, grp: (grp[t], 0)),   # Ux block
            pl.BlockSpec((tile_e, Wp), lambda t, grp: (t, 0)),       # payload
            pl.BlockSpec((1, tile_e), lambda t, grp: (0, t)),        # dst ids
        ],
        out_specs=pl.BlockSpec((v_blk, Hp), lambda t, grp: (grp[t], 0)),
        scratch_shapes=[pltpu.VMEM((v_blk, Wp), f32)],   # [agg | gate_sum]
    )

    cost = pl.CostEstimate(
        flops=int(2 * Ep * v_blk * Wp),
        transcendentals=int(Vp * Hp) if aggregation == 'mean' else 0,
        bytes_accessed=int(2 * Ep * Wp + 4 * Ep + 2 * 4 * Vp * Hp + 4 * T))

    out_p = pl.pallas_call(
        kernel,
        out_shape=jax.ShapeDtypeStruct((Vp, Hp), x.dtype),
        grid_spec=grid_spec,
        compiler_params=pltpu.CompilerParams(
            dimension_semantics=("arbitrary",),      # sequential accumulation
            vmem_limit_bytes=48 * 1024 * 1024),
        cost_estimate=cost,
    )(jnp.asarray(block_to_group), ux_p, payload, dst_pad)

    return out_p[:V, :H]


def node_features_ref(x, edge_gate, edge_index, params, aggregation='mean'):
    """Pure-JAX reference mirroring the PyTorch forward exactly."""
    src, dst = edge_index
    Ux = x @ params['Uw'] + params['Ub']
    Vx = x @ params['Vw'] + params['Vb']
    gated = Vx[src] * edge_gate
    aggregated = jnp.zeros_like(x).at[dst].add(gated)
    if aggregation == 'mean':
        gate_sum = jnp.zeros_like(x).at[dst].add(edge_gate)
        aggregated = aggregated / (gate_sum + 1e-20)
    return Ux + aggregated


if __name__ == "__main__":
    key = jax.random.PRNGKey(0)
    V, H, E = 20, 32, 600   # num_nodes, hidden_dim, num_edges (small demo)
    ks = jax.random.split(key, 8)

    x = jax.random.normal(ks[0], (V, H), jnp.float32)
    edge_gate = jax.nn.sigmoid(jax.random.normal(ks[1], (E, H), jnp.float32))
    src = jax.random.randint(ks[2], (E,), 0, V, jnp.int32)
    dst = jax.random.randint(ks[3], (E,), 0, V, jnp.int32)

    # Deterministic nn.Linear-style init (uniform in [-1/sqrt(H), 1/sqrt(H)]).
    bound = float(H) ** -0.5
    params = {
        'Uw': jax.random.uniform(ks[4], (H, H), jnp.float32, -bound, bound),
        'Ub': jax.random.uniform(ks[5], (H,), jnp.float32, -bound, bound),
        'Vw': jax.random.uniform(ks[6], (H, H), jnp.float32, -bound, bound),
        'Vb': jax.random.uniform(ks[7], (H,), jnp.float32, -bound, bound),
    }

    ok = True
    for agg in ('mean', 'sum'):
        # Small tiles here to exercise multi-group / multi-tile accumulation;
        # production defaults are v_blk=256, tile_e=256 (128 on v5e).
        out = node_features(x, edge_gate, (src, dst), params, aggregation=agg,
                            v_blk=8, tile_e=128)
        out = jax.block_until_ready(out)
        ref = node_features_ref(x, edge_gate, (src, dst), params,
                                aggregation=agg)
        assert out.shape == (V, H)
        # bf16 MXU payload + EUP approximate reciprocal -> ~1e-2 tolerance.
        ok &= bool(jnp.allclose(out, ref, rtol=2e-2, atol=2e-2))

    assert ok, "mismatch vs reference"
    print("KERNEL_OK")
</pallas_src>

<mosaic_0001>
module attributes {stable_mosaic.version = 11 : i64} {
  func.func @_scatter_kernel(%arg0: i32, %arg1: memref<5xi32, #tpu.memory_space<smem>>, %arg2: memref<8x128xf32, #tpu.memory_space<vmem>>, %arg3: memref<128x256xbf16, #tpu.memory_space<vmem>>, %arg4: memref<1x128xi32, #tpu.memory_space<vmem>>, %arg5: memref<8x128xf32, #tpu.memory_space<vmem>>, %arg6: memref<8x256xf32, #tpu.memory_space<vmem>>) attributes {dimension_semantics = [#tpu.dimension_semantics<arbitrary>], iteration_bounds = array<i64: 5>, scalar_prefetch = 1 : i64, scratch_operands = 1 : i64, tpu.core_type = #tpu.core_type<tc>, window_params = [{transform_indices = @transform_0, window_bounds = array<i64: 8, 128>}, {transform_indices = @transform_1, window_bounds = array<i64: 128, 256>}, {transform_indices = @transform_2, window_bounds = array<i64: 1, 128>}, {transform_indices = @transform_3, window_bounds = array<i64: 8, 128>}]} {
    %0 = arith.index_cast %arg0 : i32 to index
    %1 = memref.load %arg1[%0] : memref<5xi32, #tpu.memory_space<smem>>
    %c1_i32 = arith.constant 1 : i32
    %2 = arith.subi %arg0, %c1_i32 : i32
    %c0_i32 = arith.constant 0 : i32
    %3 = arith.maxsi %2, %c0_i32 : i32
    %4 = arith.index_cast %3 : i32 to index
    %5 = memref.load %arg1[%4] : memref<5xi32, #tpu.memory_space<smem>>
    %c1_i32_0 = arith.constant 1 : i32
    %6 = arith.addi %arg0, %c1_i32_0 : i32
    %c4_i32 = arith.constant 4 : i32
    %7 = arith.minsi %6, %c4_i32 : i32
    %8 = arith.index_cast %7 : i32 to index
    %9 = memref.load %arg1[%8] : memref<5xi32, #tpu.memory_space<smem>>
    %c0_i32_1 = arith.constant 0 : i32
    %10 = arith.cmpi eq, %arg0, %c0_i32_1 : i32
    %11 = arith.cmpi ne, %1, %5 : i32
    %12 = arith.ori %10, %11 : i1
    %c4_i32_2 = arith.constant 4 : i32
    %13 = arith.cmpi eq, %arg0, %c4_i32_2 : i32
    %14 = arith.cmpi ne, %1, %9 : i32
    %15 = arith.ori %13, %14 : i1
    %16 = arith.extui %12 : i1 to i32
    %c0_i32_3 = arith.constant 0 : i32
    %17 = arith.cmpi ne, %16, %c0_i32_3 : i32
    scf.if %17 {
      %cst_12 = arith.constant 0.000000e+00 : f32
      %35 = vector.broadcast %cst_12 : f32 to vector<8x256xf32>
      %c0_13 = arith.constant 0 : index
      %c0_14 = arith.constant 0 : index
      %36 = vector.load %arg6[%c0_13, %c0_14] : memref<8x256xf32, #tpu.memory_space<vmem>>, vector<8x256xf32>
      tpu.vector_store %arg6[%c0_13, %c0_14], %35 {strides = array<i32>} : memref<8x256xf32, #tpu.memory_space<vmem>>, vector<8x256xf32>,
    } else {
    }
    %18 = tpu.iota {dimensions = array<i32: 0>} : vector<8x128xi32>
    %c8_i32 = arith.constant 8 : i32
    %19 = arith.muli %1, %c8_i32 : i32
    %20 = vector.broadcast %19 : i32 to vector<8x128xi32>
    %21 = arith.addi %18, %20 : vector<8x128xi32>
    %c0 = arith.constant 0 : index
    %c0_4 = arith.constant 0 : index
    %22 = vector.load %arg4[%c0, %c0_4] : memref<1x128xi32, #tpu.memory_space<vmem>>, vector<1x128xi32>
    %23 = vector.broadcast %22 : vector<1x128xi32> to vector<8x128xi32>
    %24 = arith.cmpi eq, %23, %21 : vector<8x128xi32>
    %25 = arith.extui %24 : vector<8x128xi1> to vector<8x128xi32>
    %26 = arith.sitofp %25 : vector<8x128xi32> to vector<8x128xf32>
    %27 = arith.truncf %26 : vector<8x128xf32> to vector<8x128xbf16>
    %c0_5 = arith.constant 0 : index
    %c0_6 = arith.constant 0 : index
    %28 = vector.load %arg6[%c0_5, %c0_6] : memref<8x256xf32, #tpu.memory_space<vmem>>, vector<8x256xf32>
    %c0_7 = arith.constant 0 : index
    %c0_8 = arith.constant 0 : index
    %29 = vector.load %arg3[%c0_7, %c0_8] : memref<128x256xbf16, #tpu.memory_space<vmem>>, vector<128x256xbf16>
    %cst = arith.constant dense<0.000000e+00> : vector<8x256xf32>
    %30 = tpu.matmul %27, %29, %cst {dimension_numbers = #tpu.dot_dimension_numbers<[1], [0], [0], [1], [0, 0, 1, 1], [], []>} : vector<8x128xbf16>, vector<128x256xbf16>, vector<8x256xf32> -> vector<8x256xf32>
    %31 = arith.addf %28, %30 : vector<8x256xf32>
    %c0_9 = arith.constant 0 : index
    %c0_10 = arith.constant 0 : index
    %32 = vector.load %arg6[%c0_9, %c0_10] : memref<8x256xf32, #tpu.memory_space<vmem>>, vector<8x256xf32>
    tpu.vector_store %arg6[%c0_9, %c0_10], %31 {strides = array<i32>} : memref<8x256xf32, #tpu.memory_space<vmem>>, vector<8x256xf32>,
    %33 = arith.extui %15 : i1 to i32
    %c0_i32_11 = arith.constant 0 : i32
    %34 = arith.cmpi ne, %33, %c0_i32_11 : i32
    scf.if %34 {
      %c0_12 = arith.constant 0 : index
      %c0_13 = arith.constant 0 : index
      %35 = vector.load %arg6[%c0_12, %c0_13] : memref<8x256xf32, #tpu.memory_space<vmem>>, vector<8x256xf32>
      %36 = vector.extract_strided_slice %35 {offsets = [0, 0], sizes = [8, 128], strides = [1, 1]} : vector<8x256xf32> to vector<8x128xf32>
      %37 = vector.extract_strided_slice %35 {offsets = [0, 128], sizes = [8, 128], strides = [1, 1]} : vector<8x256xf32> to vector<8x128xf32>
      %cst_14 = arith.constant 9.99999968E-21 : f32
      %38 = vector.broadcast %cst_14 : f32 to vector<8x128xf32>
      %39 = arith.addf %37, %38 : vector<8x128xf32>
      %40 = tpu.reciprocal %39 {approx = true} : vector<8x128xf32> -> vector<8x128xf32>
      %41 = arith.mulf %36, %40 : vector<8x128xf32>
      %c0_15 = arith.constant 0 : index
      %c0_16 = arith.constant 0 : index
      %42 = vector.load %arg2[%c0_15, %c0_16] : memref<8x128xf32, #tpu.memory_space<vmem>>, vector<8x128xf32>
      %43 = arith.addf %42, %41 : vector<8x128xf32>
      %c0_17 = arith.constant 0 : index
      %c0_18 = arith.constant 0 : index
      %44 = vector.load %arg5[%c0_17, %c0_18] : memref<8x128xf32, #tpu.memory_space<vmem>>, vector<8x128xf32>
      tpu.vector_store %arg5[%c0_17, %c0_18], %43 {strides = array<i32>} : memref<8x128xf32, #tpu.memory_space<vmem>>, vector<8x128xf32>,
    } else {
    }
    return
  }
  func.func @transform_0(%arg0: i32, %arg1: memref<5xi32, #tpu.memory_space<smem>>) -> (i32, i32) {
    %0 = arith.index_cast %arg0 : i32 to index
    %1 = memref.load %arg1[%0] : memref<5xi32, #tpu.memory_space<smem>>
    %c0_i32 = arith.constant 0 : i32
    %c0_i32_0 = arith.constant 0 : i32
    return %1, %c0_i32 : i32, i32
  }
  func.func @transform_1(%arg0: i32, %arg1: memref<5xi32, #tpu.memory_space<smem>>) -> (i32, i32) {
    %c0_i32 = arith.constant 0 : i32
    %c0_i32_0 = arith.constant 0 : i32
    return %arg0, %c0_i32 : i32, i32
  }
  func.func @transform_2(%arg0: i32, %arg1: memref<5xi32, #tpu.memory_space<smem>>) -> (i32, i32) {
    %c0_i32 = arith.constant 0 : i32
    %c0_i32_0 = arith.constant 0 : i32
    return %c0_i32, %arg0 : i32, i32
  }
  func.func @transform_3(%arg0: i32, %arg1: memref<5xi32, #tpu.memory_space<smem>>) -> (i32, i32) {
    %0 = arith.index_cast %arg0 : i32 to index
    %1 = memref.load %arg1[%0] : memref<5xi32, #tpu.memory_space<smem>>
    %c0_i32 = arith.constant 0 : i32
    %c0_i32_0 = arith.constant 0 : i32
    return %1, %c0_i32 : i32, i32
  }
}

</mosaic_0001>

<llo_original>
// kernel: tpu_custom_call.1
$region0: #{tpu_custom_call.1}
  #allocation0 [shape = 'u32[]', space=smem, size = 0x4, offset = 0x4, fixed_abs, tag = 'smem constant byte address 0x4 - core index']
  #allocation1 [shape = 'u32[144,128]{1,0:T(1,128)}', space=vmem, size = 0x12000, scoped, tag = 'internal scratch']
  #allocation2 [shape = 'f32[8,256]{1,0:T(8,128)}', space=vmem, size = 0x2000, scoped, tag = 'scratch operand']
  #allocation3 [shape = 's32[1]{0}', space=sflag, size = 0x4, scoped, tag = 'scoped memory for tpu_custom_call.1']
  #allocation4 [shape = 'u8[512]{0}', space=smem, size = 0x200, scoped, tag = 'prefetched SMEM operand 0']
  %s0 = inlined_call_operand.hbm [shape: s32[5], index: 0, kind: input, shape index: {}]
  %s1 = inlined_call_operand.hbm [shape: f32[24,128], index: 1, kind: input, shape index: {}]
  %s2 = inlined_call_operand.hbm [shape: bf16[640,256], index: 2, kind: input, shape index: {}]
  %s3 = inlined_call_operand.vmem [shape: s32[1,640], index: 3, kind: input, shape index: {}]
  %s4 = inlined_call_operand.hbm [shape: f32[24,128], index: 4, kind: output, shape index: {}]
  %s5 = sld [smem:[#allocation0]]
  $region61: #{tpu_custom_call.1} parent=0
    _
  %s7 = ssub.s32 1, %s5
  %s8 = scalar_select 0, %s7, %s5
  %10 = dma.hbm_to_smem %s0, 16, [#allocation4], [#allocation3]
  %11 = dma.done [#allocation3], 16
  %12 = sfence
  $region1: #{tpu_custom_call.1} parent=0
    #allocation5 [shape = 'u8[8192]{0}', space=vmem, size = 0x2000, scoped, tag = 'input window, operand 1']
    #allocation6 [shape = 's32[2]{0}', space=sflag, size = 0x8, scoped, tag = 'scoped memory for tpu_custom_call.1']
    #allocation7 [shape = 's32[2]{0}', space=sflag, size = 0x8, scoped, tag = 'scoped memory for tpu_custom_call.1']
    #allocation8 [shape = 'u8[131072]{0}', space=vmem, size = 0x20000, scoped, tag = 'input window, operand 2']
    #allocation9 [shape = 's32[2]{0}', space=sflag, size = 0x8, scoped, tag = 'scoped memory for tpu_custom_call.1']
    #allocation10 [shape = 'u8[8192]{0}', space=vmem, size = 0x2000, scoped, tag = 'output window, operand 0']
    %13 = vsyncpa [#allocation6], 0
    %s14 = scalar_lea.sflag [#allocation6], 1
    %15 = vsyncpa %s14, 0
    %16 = vsyncpa [#allocation9], 0
    %s17 = scalar_lea.sflag [#allocation9], 1
    %18 = vsyncpa %s17, 0
    %19 = vsyncpa [#allocation7], 0
    %s20 = scalar_lea.sflag [#allocation7], 1
    %21 = vsyncpa %s20, 0
    loop: start=0, step=1, limit=7
    $region2: #{tpu_custom_call.1} parent=1 // loop_pre_header
      _
    $region3: #{tpu_custom_call.1} parent=1 // loop_header
      %s23 = sphi 0, %s27
      %p24 = scmp.ge.s32.totalorder %s23, 7
      %s35 = sphi 0, %s37
      %s38 = sphi 0, %s35
      %s39 = sphi 0, %s38
      %s55 = sphi 0, %s39
      %s61 = sphi 0, %s63
      %s64 = sphi 0, %s61
      %s65 = sphi 0, %s64
      %s81 = sphi 0, %s65
      %s87 = sphi 0, %s89
      %s90 = sphi 0, %s87
      %s91 = sphi 0, %s90
      %s107 = sphi 0, %s91
      %s115 = sphi 0, %s117
      %s118 = sphi 0, %s115
      %s119 = sphi 0, %s118
      %s135 = sphi 0, %s119
    $region4: #{tpu_custom_call.1} parent=1 // loop_header_branch
      %26 = sbr.rel (%p24) target = $region8
    $region5: #{tpu_custom_call.1} parent=1 // loop_body
      %s28 = ssub.s32 %s23, 1
      %s29 = ssub.s32 %s23, 2
      %s30 = sadd.s32 %s23, 1
      %s31 = sld [smem:[#allocation4 + %s23]]
      %s32 = sld [smem:[#allocation4 + %s30]]
      %s33 = ssub.s32 %s31, %s32
      %p34 = scmp.eq.s32.totalorder %s33, 0
      %s36 = sadd.s32 %s35, 1
      %s37 = scalar_select %p34, %s35, %s36
      %p40 = pneg %p34
      %p41 = scmp.eq.s32.totalorder %s23, 4
      %p42 = por %p40, %p41
      %p43 = scmp.ne.s32.totalorder %s35, %s38
      %p44 = scmp.eq.s32.totalorder %s23, 0
      %p45 = por %p43, %p44
      %p46 = scmp.ne.s32.totalorder %s35, %s38
      %p47 = scmp.eq.s32.totalorder %s28, 4
      %p48 = por %p46, %p47
      %p49 = scmp.ne.s32.totalorder %s38, %s39
      %p50 = scmp.eq.s32.totalorder %s28, 0
      %p51 = por %p49, %p50
      %p52 = scmp.ne.s32.totalorder %s38, %s39
      %p53 = scmp.eq.s32.totalorder %s29, 4
      %p54 = por %p52, %p53
      %p56 = scmp.ne.s32.totalorder %s39, %s55
      %p57 = scmp.eq.s32.totalorder %s29, 0
      %p58 = por %p56, %p57
      %s59 = ssub.s32 %s23, %s30
      %p60 = scmp.eq.s32.totalorder %s59, 0
      %s62 = sadd.s32 %s61, 1
      %s63 = scalar_select %p60, %s61, %s62
      %p66 = pneg %p60
      %p67 = scmp.eq.s32.totalorder %s23, 4
      %p68 = por %p66, %p67
      %p69 = scmp.ne.s32.totalorder %s61, %s64
      %p70 = scmp.eq.s32.totalorder %s23, 0
      %p71 = por %p69, %p70
      %p72 = scmp.ne.s32.totalorder %s61, %s64
      %p73 = scmp.eq.s32.totalorder %s28, 4
      %p74 = por %p72, %p73
      %p75 = scmp.ne.s32.totalorder %s64, %s65
      %p76 = scmp.eq.s32.totalorder %s28, 0
      %p77 = por %p75, %p76
      %p78 = scmp.ne.s32.totalorder %s64, %s65
      %p79 = scmp.eq.s32.totalorder %s29, 4
      %p80 = por %p78, %p79
      %p82 = scmp.ne.s32.totalorder %s65, %s81
      %p83 = scmp.eq.s32.totalorder %s29, 0
      %p84 = por %p82, %p83
      %s85 = ssub.s32 %s23, %s30
      %p86 = scmp.eq.s32.totalorder %s85, 0
      %s88 = sadd.s32 %s87, 1
      %s89 = scalar_select %p86, %s87, %s88
      %p92 = pneg %p86
      %p93 = scmp.eq.s32.totalorder %s23, 4
      %p94 = por %p92, %p93
      %p95 = scmp.ne.s32.totalorder %s87, %s90
      %p96 = scmp.eq.s32.totalorder %s23, 0
      %p97 = por %p95, %p96
      %p98 = scmp.ne.s32.totalorder %s87, %s90
      %p99 = scmp.eq.s32.totalorder %s28, 4
      %p100 = por %p98, %p99
      %p101 = scmp.ne.s32.totalorder %s90, %s91
      %p102 = scmp.eq.s32.totalorder %s28, 0
      %p103 = por %p101, %p102
      %p104 = scmp.ne.s32.totalorder %s90, %s91
      %p105 = scmp.eq.s32.totalorder %s29, 4
      %p106 = por %p104, %p105
      %p108 = scmp.ne.s32.totalorder %s91, %s107
      %p109 = scmp.eq.s32.totalorder %s29, 0
      %p110 = por %p108, %p109
      %s111 = sld [smem:[#allocation4 + %s23]]
      %s112 = sld [smem:[#allocation4 + %s30]]
      %s113 = ssub.s32 %s111, %s112
      %p114 = scmp.eq.s32.totalorder %s113, 0
      %s116 = sadd.s32 %s115, 1
      %s117 = scalar_select %p114, %s115, %s116
      %p120 = pneg %p114
      %p121 = scmp.eq.s32.totalorder %s23, 4
      %p122 = por %p120, %p121
      %p123 = scmp.ne.s32.totalorder %s115, %s118
      %p124 = scmp.eq.s32.totalorder %s23, 0
      %p125 = por %p123, %p124
      %p126 = scmp.ne.s32.totalorder %s115, %s118
      %p127 = scmp.eq.s32.totalorder %s28, 4
      %p128 = por %p126, %p127
      %p129 = scmp.ne.s32.totalorder %s118, %s119
      %p130 = scmp.eq.s32.totalorder %s28, 0
      %p131 = por %p129, %p130
      %p132 = scmp.ne.s32.totalorder %s118, %s119
      %p133 = scmp.eq.s32.totalorder %s29, 4
      %p134 = por %p132, %p133
      %p136 = scmp.ne.s32.totalorder %s119, %s135
      %p137 = scmp.eq.s32.totalorder %s29, 0
      %p138 = por %p136, %p137
      %p139 = scmp.le.s32.totalorder 1, %s23
      %p140 = scmp.lt.s32.totalorder %s23, 6
      %p141 = pnand %p139, %p140
      %p142 = pneg %p141
      // Predicated region
      $region9: #{tpu_custom_call.1} parent=5 // pred_check
        _
      $region10: #{tpu_custom_call.1} parent=5 // pred_check_branch
        %144 = sbr.rel (%p141) target = $region12
      $region11: #{tpu_custom_call.1} parent=5 // pred_region
        %s145 = ssub.s32 %s23, 1
      $region12: #{tpu_custom_call.1} parent=5 // pred_fallthru
        _
      %p146 = scmp.lt.s32.totalorder %s23, 5
      // Predicated region
      $region13: #{tpu_custom_call.1} parent=5 // pred_check
        %p147 = pneg %p146
      $region14: #{tpu_custom_call.1} parent=5 // pred_check_branch
        %149 = sbr.rel (%p147) target = $region16
      $region15: #{tpu_custom_call.1} parent=5 // pred_region
        // Predicated region
        $region17: #{tpu_custom_call.1} parent=15 // pred_check
          %p150 = pneg %p45
        $region18: #{tpu_custom_call.1} parent=15 // pred_check_branch
          %152 = sbr.rel (%p150) target = $region20
        $region19: #{tpu_custom_call.1} parent=15 // pred_region
          %s153 = sand.u32 %s35, 1
          %s154 = scalar_lea.sflag [#allocation6], %s153
          %s155 = sand.u32 %s35, 1
          %s156 = smul.addr %s155, 8
          %s157 = scalar_lea.vmem [#allocation5], %s156
          %s158 = sld [smem:[#allocation4 + %s23]]
          %s160 = ssub.s32 128, 128
          %161 = vsyncadd %s154, %s160
          %s162 = smul.addr %s158, 128
          %s163 = scalar_lea.hbm %s1, %s162
          %s165 = sshll.u32 %s157, 4
          %s166 = int_to_ptr.vmem [resolvable:$true] %s165
          %168 = dma.hbm_to_vmem [thread:$0]  %s163, 128, %s166, %s154
        $region20: #{tpu_custom_call.1} parent=15 // pred_fallthru
          _
        // Predicated region
        $region21: #{tpu_custom_call.1} parent=15 // pred_check
          %p169 = pneg %p71
        $region22: #{tpu_custom_call.1} parent=15 // pred_check_branch
          %171 = sbr.rel (%p169) target = $region24
        $region23: #{tpu_custom_call.1} parent=15 // pred_region
          %s172 = sand.u32 %s61, 1
          %s173 = scalar_lea.sflag [#allocation9], %s172
          %s174 = sand.u32 %s61, 1
          %s175 = smul.addr %s174, 128
          %s176 = scalar_lea.vmem [#allocation8], %s175
          %s177 = smul.u32 16, %s23
          %s179 = ssub.s32 2048, 2048
          %180 = vsyncadd %s173, %s179
          %s181 = smul.addr %s177, 2
          %s182 = smul.addr %s181, 64
          %s183 = scalar_lea.hbm %s2, %s182
          %s184 = sshll.u32 %s176, 4
          %s185 = int_to_ptr.vmem [resolvable:$true] %s184
          %190 = dma.hbm_to_vmem [thread:$0]  %s183, 2048, %s185, %s173, 128, 128, 8
        $region24: #{tpu_custom_call.1} parent=15 // pred_fallthru
          _
        // Predicated region
        $region25: #{tpu_custom_call.1} parent=15 // pred_check
          %p191 = pneg %p97
        $region26: #{tpu_custom_call.1} parent=15 // pred_check_branch
          %193 = sbr.rel (%p191) target = $region28
        $region27: #{tpu_custom_call.1} parent=15 // pred_region
          %p194 = scmp.lt.s32.totalorder %s23, 4
          %s195 = scalar_select %p194, %s23, 4
          %s196 = scalar_lea.vmem %s3, %s195
        $region28: #{tpu_custom_call.1} parent=15 // pred_fallthru
          _
      $region16: #{tpu_custom_call.1} parent=5 // pred_fallthru
        _
      %p197 = scmp.le.s32.totalorder 1, %s23
      %p198 = scmp.lt.s32.totalorder %s23, 6
      %p199 = pnand %p197, %p198
      %p200 = pneg %p199
      // Predicated region
      $region29: #{tpu_custom_call.1} parent=5 // pred_check
        _
      $region30: #{tpu_custom_call.1} parent=5 // pred_check_branch
        %202 = sbr.rel (%p199) target = $region32
      $region31: #{tpu_custom_call.1} parent=5 // pred_region
        %s203 = ssub.s32 %s23, 1
        %s204 = sand.u32 %s38, 1
        %s205 = scalar_lea.sflag [#allocation6], %s204
        %s206 = sand.u32 %s38, 1
        %s207 = smul.addr %s206, 8
        %s208 = scalar_lea.vmem [#allocation5], %s207
        // Predicated region
        $region33: #{tpu_custom_call.1} parent=31 // pred_check
          %p209 = pneg %p51
        $region34: #{tpu_custom_call.1} parent=31 // pred_check_branch
          %211 = sbr.rel (%p209) target = $region36
        $region35: #{tpu_custom_call.1} parent=31 // pred_region
          %212 = dma.done %s205, 128
        $region36: #{tpu_custom_call.1} parent=31 // pred_fallthru
          _
        %s213 = sand.u32 %s64, 1
        %s214 = scalar_lea.sflag [#allocation9], %s213
        %s215 = sand.u32 %s64, 1
        %s216 = smul.addr %s215, 128
        %s217 = scalar_lea.vmem [#allocation8], %s216
        // Predicated region
        $region37: #{tpu_custom_call.1} parent=31 // pred_check
          %p218 = pneg %p77
        $region38: #{tpu_custom_call.1} parent=31 // pred_check_branch
          %220 = sbr.rel (%p218) target = $region40
        $region39: #{tpu_custom_call.1} parent=31 // pred_region
          %221 = dma.done %s214, 2048
        $region40: #{tpu_custom_call.1} parent=31 // pred_fallthru
          _
        %s222 = sand.u32 %s38, 1
        %s223 = scalar_lea.sflag [#allocation6], %s222
        %s224 = sand.u32 %s38, 1
        %s225 = smul.addr %s224, 8
        %s226 = scalar_lea.vmem [#allocation5], %s225
        %p227 = pneg %p51
        %p228 = pneg %p48
        %s229 = sand.u32 %s64, 1
        %s230 = scalar_lea.sflag [#allocation9], %s229
        %s231 = sand.u32 %s64, 1
        %s232 = smul.addr %s231, 128
        %s233 = scalar_lea.vmem [#allocation8], %s232
        %p234 = pneg %p77
        %p235 = pneg %p74
        %p236 = scmp.lt.s32.totalorder %s28, 4
        %s237 = scalar_select %p236, %s28, 4
        %s238 = scalar_lea.vmem %s3, %s237
        %p239 = pneg %p103
        %p240 = pneg %p100
        %p241 = pneg %p131
        %p242 = pneg %p128
        %s243 = sand.u32 %s118, 1
        %s244 = scalar_lea.sflag [#allocation7], %s243
        %s245 = sand.u32 %s118, 1
        %s246 = smul.addr %s245, 8
        %s247 = scalar_lea.vmem [#allocation10], %s246
        %s248 = sld [smem:[#allocation4 + %s28]]
        %s249 = smul.u32 16, %s28
        %p250 = scmp.lt.s32.totalorder %s28, 4
        %s251 = scalar_select %p250, %s28, 4
        %s252 = scalar_lea.vmem %s3, %s251
        %s253 = sld [smem:[#allocation4 + %s28]]
        %s255 = sld [smem:[#allocation4 + %s28]]
        %s256 = ssub.s32 %s28, 1
        %p257 = scmp.gt.s32.totalorder %s256, 0
        %s258 = scalar_select %p257, %s256, 0
        %s259 = sld [smem:[#allocation4 + %s258]]
        %s260 = sadd.s32 %s28, 1
        %p261 = scmp.lt.s32.totalorder %s260, 4
        %s262 = scalar_select %p261, %s260, 4
        %s263 = sld [smem:[#allocation4 + %s262]]
        %p264 = scmp.eq.s32.totalorder %s28, 0
        %p265 = scmp.ne.s32.totalorder %s255, %s259
        %p266 = por %p264, %p265
        %p267 = scmp.eq.s32.totalorder %s28, 4
        %p268 = scmp.ne.s32.totalorder %s255, %s263
        %p269 = por %p267, %p268
        // Predicated region
        $region41: #{tpu_custom_call.1} parent=31 // pred_check
          %p270 = pneg %p266
        $region42: #{tpu_custom_call.1} parent=31 // pred_check_branch
          %272 = sbr.rel (%p270) target = $region44
        $region43: #{tpu_custom_call.1} parent=31 // pred_region
          %273 = vst [vmem:[#allocation2] sm:$0xff] 0.0
          %274 = vst [vmem:[#allocation2 + $0x8] sm:$0xff] 0.0
        $region44: #{tpu_custom_call.1} parent=31 // pred_fallthru
          _
        %v275 = vlaneseq
        %v276 = vshrl.u32 %v275, 7
        %s277 = smul.u32 %s255, 8
        %v278 = vstv %s277
        %v279 = vadd.s32 %v276, %v278
        %v280 = vld [vmem:[%s252] sm:$0x1]
        %v281 = vlaneseq
        %v282 = vshrl.u32 %v281, 7
        %v283 = vsub.s32 0, %v282
        %v284 = vrot.slane %v280, %v283
        %vm285 = vcmp.eq.s32.totalorder %v284, %v279
        %v286 = vsel %vm285, 1, 0
        %v287 = vcvt.s32.f32 %v286
        %v288 = vpack.c.bf16 %v287, %v287
        %v289 = vld [vmem:[#allocation2] sm:$0xff]
        %v290 = vld [vmem:[#allocation2 + $0x8] sm:$0xff]
        %v291 = vld [vmem:[%s217] sm:$0xff]
        %v292 = vld [vmem:[%s217 + $0x8] sm:$0xff]
        %v293 = vld [vmem:[%s217 + $0x10] sm:$0xff]
        %v294 = vld [vmem:[%s217 + $0x18] sm:$0xff]
        %v295 = vld [vmem:[%s217 + $0x20] sm:$0xff]
        %v296 = vld [vmem:[%s217 + $0x28] sm:$0xff]
        %v297 = vld [vmem:[%s217 + $0x30] sm:$0xff]
        %v298 = vld [vmem:[%s217 + $0x38] sm:$0xff]
        %v299 = vld [vmem:[%s217 + $0x40] sm:$0xff]
        %v300 = vld [vmem:[%s217 + $0x48] sm:$0xff]
        %v301 = vld [vmem:[%s217 + $0x50] sm:$0xff]
        %v302 = vld [vmem:[%s217 + $0x58] sm:$0xff]
        %v303 = vld [vmem:[%s217 + $0x60] sm:$0xff]
        %v304 = vld [vmem:[%s217 + $0x68] sm:$0xff]
        %v305 = vld [vmem:[%s217 + $0x70] sm:$0xff]
        %v306 = vld [vmem:[%s217 + $0x78] sm:$0xff]
        %v323 = vunpack.c.l.b16 %v291
        %v324 = vunpack.c.h.b16 %v291
        %v325 = vunpack.c.l.b16 %v292
        %v326 = vunpack.c.h.b16 %v292
        %v327 = vunpack.c.l.b16 %v293
        %v328 = vunpack.c.h.b16 %v293
        %v329 = vunpack.c.l.b16 %v294
        %v330 = vunpack.c.h.b16 %v294
        %v331 = vunpack.c.l.b16 %v295
        %v332 = vunpack.c.h.b16 %v295
        %v333 = vunpack.c.l.b16 %v296
        %v334 = vunpack.c.h.b16 %v296
        %v335 = vunpack.c.l.b16 %v297
        %v336 = vunpack.c.h.b16 %v297
        %v337 = vunpack.c.l.b16 %v298
        %v338 = vunpack.c.h.b16 %v298
        %v339 = vunpack.c.l.b16 %v299
        %v340 = vunpack.c.h.b16 %v299
        %v341 = vunpack.c.l.b16 %v300
        %v342 = vunpack.c.h.b16 %v300
        %v343 = vunpack.c.l.b16 %v301
        %v344 = vunpack.c.h.b16 %v301
        %v345 = vunpack.c.l.b16 %v302
        %v346 = vunpack.c.h.b16 %v302
        %v347 = vunpack.c.l.b16 %v303
        %v348 = vunpack.c.h.b16 %v303
        %v349 = vunpack.c.l.b16 %v304
        %v350 = vunpack.c.h.b16 %v304
        %v351 = vunpack.c.l.b16 %v305
        %v352 = vunpack.c.h.b16 %v305
        %v353 = vunpack.c.l.b16 %v306
        %v354 = vunpack.c.h.b16 %v306
        %v355 = vpack.c.b16 %v325, %v323
        %v356 = vpack.c.b16 %v326, %v324
        %v357 = vpack.c.b16 %v329, %v327
        %v358 = vpack.c.b16 %v330, %v328
        %v359 = vpack.c.b16 %v333, %v331
        %v360 = vpack.c.b16 %v334, %v332
        %v361 = vpack.c.b16 %v337, %v335
        %v362 = vpack.c.b16 %v338, %v336
        %v363 = vpack.c.b16 %v341, %v339
        %v364 = vpack.c.b16 %v342, %v340
        %v365 = vpack.c.b16 %v345, %v343
        %v366 = vpack.c.b16 %v346, %v344
        %v367 = vpack.c.b16 %v349, %v347
        %v368 = vpack.c.b16 %v350, %v348
        %v369 = vpack.c.b16 %v353, %v351
        %v370 = vpack.c.b16 %v354, %v352
        %387 = vmatprep.subr.bf16.mxu0 %v356
        %388 = vmatpush1.bf16.msra.mxu0 %v355
        %389 = vmatprep.subr.bf16.mxu0 %v358
        %390 = vmatpush1.bf16.msra.mxu0 %v357
        %391 = vmatprep.subr.bf16.mxu0 %v360
        %392 = vmatpush1.bf16.msra.mxu0 %v359
        %393 = vmatprep.subr.bf16.mxu0 %v362
        %394 = vmatpush1.bf16.msra.mxu0 %v361
        %395 = vmatprep.subr.bf16.mxu0 %v364
        %396 = vmatpush1.bf16.msra.mxu0 %v363
        %397 = vmatprep.subr.bf16.mxu0 %v366
        %398 = vmatpush1.bf16.msra.mxu0 %v365
        %399 = vmatprep.subr.bf16.mxu0 %v368
        %400 = vmatpush1.bf16.msra.mxu0 %v367
        %401 = vmatprep.subr.bf16.mxu0 %v370
        %402 = vmatpush1.bf16.msra.mxu0 %v369
        %403 = vmatprep.subr.bf16.mxu0 0
        %404 = vmatpush1.bf16.msra.mxu0 0
        %405 = vmatprep.subr.bf16.mxu0 0
        %406 = vmatpush1.bf16.msra.mxu0 0
        %407 = vmatprep.subr.bf16.mxu0 0
        %408 = vmatpush1.bf16.msra.mxu0 0
        %409 = vmatprep.subr.bf16.mxu0 0
        %410 = vmatpush1.bf16.msra.mxu0 0
        %411 = vmatprep.subr.bf16.mxu0 0
        %412 = vmatpush1.bf16.msra.mxu0 0
        %413 = vmatprep.subr.bf16.mxu0 0
        %414 = vmatpush1.bf16.msra.mxu0 0
        %415 = vmatprep.subr.bf16.mxu0 0
        %416 = vmatpush1.bf16.msra.mxu0 0
        %417 = vmatprep.subr.bf16.mxu0 0
        %418 = vmatpush1.bf16.msra.mxu0 0
        %419 = vmatprep.mubr.bf16.mxu0 0
        %420 = vmatmul.mubr.bf16.gmra.mrb[0].mxu0 %v288
        %v421 = vpop.f32.mrb[0].mxu0
        %v422 = vadd.f32 0.0, %v421
        %v423 = vpop.f32.mrb[0].mxu0
        %v424 = vadd.f32 0.0, %v423
        %v425 = vpop.f32.mrb[0].mxu0
        %v426 = vpop.f32.mrb[0].mxu0
        %427 = vdwg.mxu0
        %v428 = vadd.f32 %v289, %v422
        %v429 = vadd.f32 %v290, %v424
        %430 = vst [vmem:[#allocation2] sm:$0xff] %v428
        %431 = vst [vmem:[#allocation2 + $0x8] sm:$0xff] %v429
        // Predicated region
        $region45: #{tpu_custom_call.1} parent=31 // pred_check
          %p432 = pneg %p269
        $region46: #{tpu_custom_call.1} parent=31 // pred_check_branch
          %434 = sbr.rel (%p432) target = $region48
        $region47: #{tpu_custom_call.1} parent=31 // pred_region
          %v435 = vld [vmem:[#allocation2] sm:$0xff]
          %v436 = vld [vmem:[#allocation2 + $0x8] sm:$0xff]
          %v437 = vadd.f32 %v436, 1e-20
          %v438 = vrcp.pop %v437
          %v439 = vmul.f32 %v435, %v438
          %v440 = vld [vmem:[%s208] sm:$0xff]
          %v441 = vadd.f32 %v440, %v439
          %442 = vst [vmem:[%s247] sm:$0xff] %v441
        $region48: #{tpu_custom_call.1} parent=31 // pred_fallthru
          _
        %s443 = sand.u32 %s118, 1
        %s444 = scalar_lea.sflag [#allocation7], %s443
        %s445 = sand.u32 %s118, 1
        %s446 = smul.addr %s445, 8
        %s447 = scalar_lea.vmem [#allocation10], %s446
        // Predicated region
        $region49: #{tpu_custom_call.1} parent=31 // pred_check
          %p448 = pneg %p128
        $region50: #{tpu_custom_call.1} parent=31 // pred_check_branch
          %450 = sbr.rel (%p448) target = $region52
        $region51: #{tpu_custom_call.1} parent=31 // pred_region
          %s451 = sld [smem:[#allocation4 + %s28]]
          %s453 = ssub.s32 128, 128
          %454 = vsyncadd %s444, %s453
          %s455 = smul.addr %s451, 128
          %s456 = scalar_lea.hbm %s4, %s455
          %s458 = sshll.u32 %s447, 4
          %s459 = int_to_ptr.vmem [resolvable:$true] %s458
          %461 = dma.vmem_to_hbm [thread:$0]  %s459, 128, %s456, %s444
        $region52: #{tpu_custom_call.1} parent=31 // pred_fallthru
          _
      $region32: #{tpu_custom_call.1} parent=5 // pred_fallthru
        _
      %p462 = scmp.le.s32.totalorder 2, %s23
      // Predicated region
      $region53: #{tpu_custom_call.1} parent=5 // pred_check
        %p463 = pneg %p462
      $region54: #{tpu_custom_call.1} parent=5 // pred_check_branch
        %465 = sbr.rel (%p463) target = $region56
      $region55: #{tpu_custom_call.1} parent=5 // pred_region
        %s466 = ssub.s32 %s23, 2
        // Predicated region
        $region57: #{tpu_custom_call.1} parent=55 // pred_check
          %p467 = pneg %p134
        $region58: #{tpu_custom_call.1} parent=55 // pred_check_branch
          %469 = sbr.rel (%p467) target = $region60
        $region59: #{tpu_custom_call.1} parent=55 // pred_region
          %s470 = sand.u32 %s119, 1
          %s471 = scalar_lea.sflag [#allocation7], %s470
          %s472 = sand.u32 %s119, 1
          %s473 = smul.addr %s472, 8
          %s474 = scalar_lea.vmem [#allocation10], %s473
          %475 = dma.done %s471, 128
        $region60: #{tpu_custom_call.1} parent=55 // pred_fallthru
          _
      $region56: #{tpu_custom_call.1} parent=5 // pred_fallthru
        _
    $region6: #{tpu_custom_call.1} parent=1 // loop_footer
      %s27 = sadd.s32 1, %s23
    $region7: #{tpu_custom_call.1} parent=1 // loop_footer_branch
      %22 = sbr.rel target = $region3
    $region8: #{tpu_custom_call.1} parent=1 // loop_exit
      _
    %476 = vsyncpa [#allocation6], 1
    %s477 = scalar_lea.sflag [#allocation6], 1
    %478 = vsyncpa %s477, 1
    %479 = vsyncpa [#allocation9], 1
    %s480 = scalar_lea.sflag [#allocation9], 1
    %481 = vsyncpa %s480, 1
    %482 = vsyncpa [#allocation7], 1
    %s483 = scalar_lea.sflag [#allocation7], 1
    %484 = vsyncpa %s483, 1

</llo_original>
